<compile_context>
chip_gen: v5e
topology: v5e:2x2
jax: 0.10.0
libtpu: 0.0.40
codegen_flags: <defaults>
</compile_context>

<pallas_src>
import functools

import jax
import jax.numpy as jnp
import numpy as np
from jax.experimental import pallas as pl
from jax.experimental.pallas import tpu as pltpu


def _lstm_block_kernel(xw_ref, m_ref, wh_ref, out_ref, h_sc, c_sc,
                       *, t_block, hidden):
    """One grid step = t_block timesteps of the recurrence for one batch block.

    xw_ref : (t_block, Bb, 4H) bf16  precomputed x @ Wx + b (gate order f,i,o,c~)
    m_ref  : (t_block, Bb, 1)  f32   padding mask
    wh_ref : (H, 4H)           bf16  recurrent weight (rows multiply hid)
    out_ref: (t_block, Bb, 4H) f32   fused lane-dense record per step:
                                     [:, :, 0H:1H]=h, [1H:2H]=i, [2H:3H]=o, [3H:4H]=c~
    h_sc/c_sc: (Bb, H) f32 VMEM scratch persisting across T-blocks.
    """
    H = hidden
    t_blk = pl.program_id(1)

    @pl.when(t_blk == 0)
    def _():  # init_hidden: zeros (re-inits at the start of every batch block)
        h_sc[...] = jnp.zeros_like(h_sc)
        c_sc[...] = jnp.zeros_like(c_sc)

    wh = wh_ref[...]                                   # (H, 4H) bf16, resident

    def step(i, carry):
        h, c = carry                                   # (Bb, H) f32
        xw = xw_ref[i].astype(jnp.float32)             # (Bb, 4H) f32
        m = m_ref[i]                                   # (Bb, 1)  f32

        # Single MXU matmul per step (f32 accumulation) plus the hoisted,
        # bf16-streamed input projection (already carries the bias).
        z = jnp.dot(h.astype(wh.dtype), wh,
                    preferred_element_type=jnp.float32) + xw   # (Bb, 4H) f32

        # Two wide nonlinearity passes instead of four 32-lane masked ones:
        # f, i, o are contiguous in lanes [0, 3H); c~ occupies [3H, 4H).
        sg = jax.nn.sigmoid(z[:, :3 * H])              # (Bb, 3H)
        c_tilde = jnp.tanh(z[:, 3 * H:])               # (Bb, H)
        f_g = sg[:, 0 * H:1 * H]
        i_g = sg[:, 1 * H:2 * H]
        o_g = sg[:, 2 * H:3 * H]

        c_new = f_g * c + i_g * c_tilde
        c_new = c + m * (c_new - c)                    # mask blend
        h_new = o_g * jnp.tanh(c_new)
        h_new = h + m * (h_new - h)                    # mask blend

        # One full-width (4H = 128 lane) unmasked store per step.
        out_ref[i] = jnp.concatenate([h_new, i_g, o_g, c_tilde],
                                     axis=-1).astype(out_ref.dtype)
        return h_new, c_new

    h_fin, c_fin = jax.lax.fori_loop(0, t_block, step,
                                     (h_sc[...], c_sc[...]),
                                     unroll=min(t_block, 8))
    h_sc[...] = h_fin
    c_sc[...] = c_fin


@functools.partial(jax.jit, static_argnames=("t_block", "b_block"))
def lstm_forward(x, mask, wf, bf, wi, bi, wo, bo, wc, bc,
                 *, t_block=None, b_block=None):
    """x: (T, B, nin) f32, mask: (T, B) f32. Returns (h_hist, i_hist): (T, B, H).

    b_block: keep == B on v5e/v6e (single TC); set B/2 (multiple of 8) on v7x
    with B >= 16 so the parallel batch axis can shard across both TensorCores.
    """
    T, B, nin = x.shape
    H = wf.shape[1]
    if t_block is None:
        t_block = T
    if b_block is None:
        b_block = B
    assert T % t_block == 0 and B % b_block == 0
    assert b_block == B or b_block % 8 == 0  # (8,128) tiling constraint

    # Fuse the four gates. combined = cat((hid, emb), 1) -> rows [:H] of the
    # fused weight multiply hid, rows [H:] multiply emb. Gate order: f,i,o,c~.
    w = jnp.concatenate([wf, wi, wo, wc], axis=1)                 # (H+nin, 4H)
    b = jnp.concatenate([jnp.reshape(bf, (1, H)), jnp.reshape(bi, (1, H)),
                         jnp.reshape(bo, (1, H)), jnp.reshape(bc, (1, H))],
                        axis=1)                                   # (1, 4H)
    w_h = w[:H].astype(jnp.bfloat16)                              # recurrent part
    w_x = w[H:]                                                   # input part

    # Hoisted non-recurrent input projection (+ bias): one big batched f32
    # matmul, then streamed to the kernel in bf16 (dominant HBM stream).
    xw = (jnp.einsum("tbn,ng->tbg", x, w_x,
                     preferred_element_type=jnp.float32) + b
          ).astype(jnp.bfloat16)                                   # (T, B, 4H)
    mask3 = mask.reshape(T, B, 1).astype(jnp.float32)

    grid = (B // b_block, T // t_block)
    kernel = functools.partial(_lstm_block_kernel, t_block=t_block, hidden=H)

    fused = pl.pallas_call(
        kernel,
        grid_spec=pltpu.PrefetchScalarGridSpec(
            num_scalar_prefetch=0,
            grid=grid,
            in_specs=[
                pl.BlockSpec((t_block, b_block, 4 * H), lambda bb, t: (t, bb, 0)),
                pl.BlockSpec((t_block, b_block, 1), lambda bb, t: (t, bb, 0)),
                pl.BlockSpec((H, 4 * H), lambda bb, t: (0, 0)),   # constant index
            ],
            out_specs=pl.BlockSpec((t_block, b_block, 4 * H),
                                   lambda bb, t: (t, bb, 0)),
            scratch_shapes=[
                pltpu.VMEM((b_block, H), jnp.float32),   # hidden state
                pltpu.VMEM((b_block, H), jnp.float32),   # cell state
            ],
        ),
        out_shape=jax.ShapeDtypeStruct((T, B, 4 * H), jnp.float32),
        compiler_params=pltpu.CompilerParams(
            # batch axis is truly parallel (v7x dual-TC); T is a recurrence and
            # must stay "arbitrary" (scratch re-init relies on t being the
            # minor, sequential grid axis).
            dimension_semantics=("parallel", "arbitrary"),
        ),
    )(xw, mask3, w_h)

    return fused[..., :H], fused[..., H:2 * H]


def lstm_reference(x, mask, wf, bf, wi, bi, wo, bo, wc, bc):
    """Pure-JAX f32 reference mirroring the PyTorch forward."""
    T, B, _ = x.shape
    H = wf.shape[1]

    def step(carry, inp):
        h, c = carry
        emb, m = inp
        m = m[:, None]
        comb = jnp.concatenate([h, emb], axis=1)
        f = jax.nn.sigmoid(comb @ wf + bf)
        ig = jax.nn.sigmoid(comb @ wi + bi)
        o = jax.nn.sigmoid(comb @ wo + bo)
        ct = jnp.tanh(comb @ wc + bc)
        c_t = f * c + ig * ct
        c_t = m * c_t + (1.0 - m) * c
        h_new = o * jnp.tanh(c_t)
        h_new = m * h_new + (1.0 - m) * h
        return (h_new, c_t), (h_new, ig)

    init = (jnp.zeros((B, H), jnp.float32), jnp.zeros((B, H), jnp.float32))
    _, (h_hist, i_hist) = jax.lax.scan(step, init, (x, mask))
    return h_hist, i_hist


if __name__ == "__main__":
    # Small shapes consistent with the module: seq T=8, batch B=8, nin=16, hidden=32.
    T, B, NIN, H = 8, 8, 16, 32
    K = NIN + H
    initrange = 0.1

    key = jax.random.PRNGKey(0)
    kx, km, kf, ki, ko, kc = jax.random.split(key, 6)

    x = jax.random.normal(kx, (T, B, NIN), dtype=jnp.float32)
    # float mask in {0, 1}, like the PyTorch padding mask
    mask = (jax.random.uniform(km, (T, B)) > 0.3).astype(jnp.float32)

    def init_w(k):
        # weight.data.uniform_(-0.1, 0.1); stored transposed as (nin+H, H),
        # hidden rows first (matching torch.cat((hid, emb), 1)).
        return jax.random.uniform(k, (K, H), jnp.float32,
                                  minval=-initrange, maxval=initrange)

    wf, wi, wo, wc = init_w(kf), init_w(ki), init_w(ko), init_w(kc)
    # bias.data.fill_(0)
    bf = bi = bo = bc = jnp.zeros((H,), jnp.float32)

    h_hist, i_hist = lstm_forward(x, mask, wf, bf, wi, bi, wo, bo, wc, bc)
    jax.block_until_ready((h_hist, i_hist))

    h_ref, i_ref = lstm_reference(x, mask, wf, bf, wi, bi, wo, bo, wc, bc)
    # Both matmul operands (recurrent weight/h AND the streamed xw projection)
    # are bf16 with f32 accumulation; observed error is ~1e-3 at T=8.
    # For long sequences or accuracy-sensitive configs keep xw in f32.
    np.testing.assert_allclose(np.asarray(h_hist), np.asarray(h_ref),
                               rtol=1e-2, atol=1e-2)
    np.testing.assert_allclose(np.asarray(i_hist), np.asarray(i_ref),
                               rtol=1e-2, atol=1e-2)

    print("KERNEL_OK")
</pallas_src>

<mosaic_0001>
module attributes {stable_mosaic.version = 11 : i64} {
  func.func @_lstm_block_kernel(%arg0: i32, %arg1: i32, %arg2: memref<8x8x128xbf16, #tpu.memory_space<vmem>>, %arg3: memref<8x8x1xf32, #tpu.memory_space<vmem>>, %arg4: memref<32x128xbf16, #tpu.memory_space<vmem>>, %arg5: memref<8x8x128xf32, #tpu.memory_space<vmem>>, %arg6: memref<8x32xf32, #tpu.memory_space<vmem>>, %arg7: memref<8x32xf32, #tpu.memory_space<vmem>>) attributes {dimension_semantics = [#tpu.dimension_semantics<parallel>, #tpu.dimension_semantics<arbitrary>], iteration_bounds = array<i64: 1, 1>, scalar_prefetch = 0 : i64, scratch_operands = 2 : i64, tpu.core_type = #tpu.core_type<tc>, window_params = [{transform_indices = @transform_0, window_bounds = array<i64: 8, 8, 128>}, {transform_indices = @transform_1, window_bounds = array<i64: 8, 8, 1>}, {pipeline_mode = #tpu.pipeline_mode<synchronous>, transform_indices = @transform_2, window_bounds = array<i64: 32, 128>}, {transform_indices = @transform_3, window_bounds = array<i64: 8, 8, 128>}]} {
    %c0_i32 = arith.constant 0 : i32
    %0 = arith.cmpi eq, %arg1, %c0_i32 : i32
    %1 = arith.extui %0 : i1 to i32
    %c0_i32_0 = arith.constant 0 : i32
    %2 = arith.cmpi ne, %1, %c0_i32_0 : i32
    scf.if %2 {
      %cst_74 = arith.constant 0.000000e+00 : f32
      %320 = vector.broadcast %cst_74 : f32 to vector<8x32xf32>
      %c0_75 = arith.constant 0 : index
      %c0_76 = arith.constant 0 : index
      %321 = vector.load %arg6[%c0_75, %c0_76] : memref<8x32xf32, #tpu.memory_space<vmem>>, vector<8x32xf32>
      tpu.vector_store %arg6[%c0_75, %c0_76], %320 {strides = array<i32>} : memref<8x32xf32, #tpu.memory_space<vmem>>, vector<8x32xf32>,
      %cst_77 = arith.constant 0.000000e+00 : f32
      %322 = vector.broadcast %cst_77 : f32 to vector<8x32xf32>
      %c0_78 = arith.constant 0 : index
      %c0_79 = arith.constant 0 : index
      %323 = vector.load %arg7[%c0_78, %c0_79] : memref<8x32xf32, #tpu.memory_space<vmem>>, vector<8x32xf32>
      tpu.vector_store %arg7[%c0_78, %c0_79], %322 {strides = array<i32>} : memref<8x32xf32, #tpu.memory_space<vmem>>, vector<8x32xf32>,
    } else {
    }
    %c0 = arith.constant 0 : index
    %c0_1 = arith.constant 0 : index
    %3 = vector.load %arg4[%c0, %c0_1] : memref<32x128xbf16, #tpu.memory_space<vmem>>, vector<32x128xbf16>
    %c0_2 = arith.constant 0 : index
    %c0_3 = arith.constant 0 : index
    %4 = vector.load %arg6[%c0_2, %c0_3] : memref<8x32xf32, #tpu.memory_space<vmem>>, vector<8x32xf32>
    %c0_4 = arith.constant 0 : index
    %c0_5 = arith.constant 0 : index
    %5 = vector.load %arg7[%c0_4, %c0_5] : memref<8x32xf32, #tpu.memory_space<vmem>>, vector<8x32xf32>
    %c0_i32_6 = arith.constant 0 : i32
    %6 = arith.index_cast %c0_i32_6 : i32 to index
    %c0_7 = arith.constant 0 : index
    %c0_8 = arith.constant 0 : index
    %7 = vector.load %arg2[%6, %c0_7, %c0_8] : memref<8x8x128xbf16, #tpu.memory_space<vmem>>, vector<1x8x128xbf16>
    %8 = vector.shape_cast %7 : vector<1x8x128xbf16> to vector<8x128xbf16>
    %9 = arith.extf %8 : vector<8x128xbf16> to vector<8x128xf32>
    %10 = arith.index_cast %c0_i32_6 : i32 to index
    %c0_9 = arith.constant 0 : index
    %c0_10 = arith.constant 0 : index
    %11 = vector.load %arg3[%10, %c0_9, %c0_10] : memref<8x8x1xf32, #tpu.memory_space<vmem>>, vector<1x8x1xf32>
    %12 = vector.shape_cast %11 : vector<1x8x1xf32> to vector<8x1xf32>
    %13 = arith.truncf %4 : vector<8x32xf32> to vector<8x32xbf16>
    %cst = arith.constant dense<0.000000e+00> : vector<8x128xf32>
    %14 = tpu.matmul %13, %3, %cst {dimension_numbers = #tpu.dot_dimension_numbers<[1], [0], [0], [1], [0, 0, 1, 1], [], []>} : vector<8x32xbf16>, vector<32x128xbf16>, vector<8x128xf32> -> vector<8x128xf32>
    %15 = arith.addf %14, %9 : vector<8x128xf32>
    %16 = vector.extract_strided_slice %15 {offsets = [0, 0], sizes = [8, 96], strides = [1, 1]} : vector<8x128xf32> to vector<8x96xf32>
    %17 = arith.negf %16 : vector<8x96xf32>
    %18 = math.exp %17 : vector<8x96xf32>
    %cst_11 = arith.constant 1.000000e+00 : f32
    %19 = vector.broadcast %cst_11 : f32 to vector<8x96xf32>
    %20 = arith.addf %19, %18 : vector<8x96xf32>
    %21 = arith.divf %19, %20 : vector<8x96xf32>
    %22 = vector.extract_strided_slice %15 {offsets = [0, 96], sizes = [8, 32], strides = [1, 1]} : vector<8x128xf32> to vector<8x32xf32>
    %23 = math.tanh %22 : vector<8x32xf32>
    %24 = vector.extract_strided_slice %21 {offsets = [0, 0], sizes = [8, 32], strides = [1, 1]} : vector<8x96xf32> to vector<8x32xf32>
    %25 = vector.extract_strided_slice %21 {offsets = [0, 32], sizes = [8, 32], strides = [1, 1]} : vector<8x96xf32> to vector<8x32xf32>
    %26 = vector.extract_strided_slice %21 {offsets = [0, 64], sizes = [8, 32], strides = [1, 1]} : vector<8x96xf32> to vector<8x32xf32>
    %27 = arith.mulf %24, %5 : vector<8x32xf32>
    %28 = arith.mulf %25, %23 : vector<8x32xf32>
    %29 = arith.addf %27, %28 : vector<8x32xf32>
    %30 = arith.subf %29, %5 : vector<8x32xf32>
    %31 = vector.broadcast %12 : vector<8x1xf32> to vector<8x32xf32>
    %32 = arith.mulf %31, %30 : vector<8x32xf32>
    %33 = arith.addf %5, %32 : vector<8x32xf32>
    %34 = math.tanh %33 : vector<8x32xf32>
    %35 = arith.mulf %26, %34 : vector<8x32xf32>
    %36 = arith.subf %35, %4 : vector<8x32xf32>
    %37 = vector.broadcast %12 : vector<8x1xf32> to vector<8x32xf32>
    %38 = arith.mulf %37, %36 : vector<8x32xf32>
    %39 = arith.addf %4, %38 : vector<8x32xf32>
    %40 = tpu.concatenate %39, %25, %26, %23 in 1 : vector<8x32xf32>, vector<8x32xf32>, vector<8x32xf32>, vector<8x32xf32> -> vector<8x128xf32>
    %41 = arith.index_cast %c0_i32_6 : i32 to index
    %c0_12 = arith.constant 0 : index
    %c0_13 = arith.constant 0 : index
    %42 = vector.load %arg5[%41, %c0_12, %c0_13] : memref<8x8x128xf32, #tpu.memory_space<vmem>>, vector<1x8x128xf32>
    %43 = vector.shape_cast %42 : vector<1x8x128xf32> to vector<8x128xf32>
    %44 = vector.shape_cast %40 : vector<8x128xf32> to vector<1x8x128xf32>
    tpu.vector_store %arg5[%41, %c0_12, %c0_13], %44 {strides = array<i32>} : memref<8x8x128xf32, #tpu.memory_space<vmem>>, vector<1x8x128xf32>,
    %c1_i32 = arith.constant 1 : i32
    %45 = arith.index_cast %c1_i32 : i32 to index
    %c0_14 = arith.constant 0 : index
    %c0_15 = arith.constant 0 : index
    %46 = vector.load %arg2[%45, %c0_14, %c0_15] : memref<8x8x128xbf16, #tpu.memory_space<vmem>>, vector<1x8x128xbf16>
    %47 = vector.shape_cast %46 : vector<1x8x128xbf16> to vector<8x128xbf16>
    %48 = arith.extf %47 : vector<8x128xbf16> to vector<8x128xf32>
    %49 = arith.index_cast %c1_i32 : i32 to index
    %c0_16 = arith.constant 0 : index
    %c0_17 = arith.constant 0 : index
    %50 = vector.load %arg3[%49, %c0_16, %c0_17] : memref<8x8x1xf32, #tpu.memory_space<vmem>>, vector<1x8x1xf32>
    %51 = vector.shape_cast %50 : vector<1x8x1xf32> to vector<8x1xf32>
    %52 = arith.truncf %39 : vector<8x32xf32> to vector<8x32xbf16>
    %cst_18 = arith.constant dense<0.000000e+00> : vector<8x128xf32>
    %53 = tpu.matmul %52, %3, %cst_18 {dimension_numbers = #tpu.dot_dimension_numbers<[1], [0], [0], [1], [0, 0, 1, 1], [], []>} : vector<8x32xbf16>, vector<32x128xbf16>, vector<8x128xf32> -> vector<8x128xf32>
    %54 = arith.addf %53, %48 : vector<8x128xf32>
    %55 = vector.extract_strided_slice %54 {offsets = [0, 0], sizes = [8, 96], strides = [1, 1]} : vector<8x128xf32> to vector<8x96xf32>
    %56 = arith.negf %55 : vector<8x96xf32>
    %57 = math.exp %56 : vector<8x96xf32>
    %cst_19 = arith.constant 1.000000e+00 : f32
    %58 = vector.broadcast %cst_19 : f32 to vector<8x96xf32>
    %59 = arith.addf %58, %57 : vector<8x96xf32>
    %60 = arith.divf %58, %59 : vector<8x96xf32>
    %61 = vector.extract_strided_slice %54 {offsets = [0, 96], sizes = [8, 32], strides = [1, 1]} : vector<8x128xf32> to vector<8x32xf32>
    %62 = math.tanh %61 : vector<8x32xf32>
    %63 = vector.extract_strided_slice %60 {offsets = [0, 0], sizes = [8, 32], strides = [1, 1]} : vector<8x96xf32> to vector<8x32xf32>
    %64 = vector.extract_strided_slice %60 {offsets = [0, 32], sizes = [8, 32], strides = [1, 1]} : vector<8x96xf32> to vector<8x32xf32>
    %65 = vector.extract_strided_slice %60 {offsets = [0, 64], sizes = [8, 32], strides = [1, 1]} : vector<8x96xf32> to vector<8x32xf32>
    %66 = arith.mulf %63, %33 : vector<8x32xf32>
    %67 = arith.mulf %64, %62 : vector<8x32xf32>
    %68 = arith.addf %66, %67 : vector<8x32xf32>
    %69 = arith.subf %68, %33 : vector<8x32xf32>
    %70 = vector.broadcast %51 : vector<8x1xf32> to vector<8x32xf32>
    %71 = arith.mulf %70, %69 : vector<8x32xf32>
    %72 = arith.addf %33, %71 : vector<8x32xf32>
    %73 = math.tanh %72 : vector<8x32xf32>
    %74 = arith.mulf %65, %73 : vector<8x32xf32>
    %75 = arith.subf %74, %39 : vector<8x32xf32>
    %76 = vector.broadcast %51 : vector<8x1xf32> to vector<8x32xf32>
    %77 = arith.mulf %76, %75 : vector<8x32xf32>
    %78 = arith.addf %39, %77 : vector<8x32xf32>
    %79 = tpu.concatenate %78, %64, %65, %62 in 1 : vector<8x32xf32>, vector<8x32xf32>, vector<8x32xf32>, vector<8x32xf32> -> vector<8x128xf32>
    %80 = arith.index_cast %c1_i32 : i32 to index
    %c0_20 = arith.constant 0 : index
    %c0_21 = arith.constant 0 : index
    %81 = vector.load %arg5[%80, %c0_20, %c0_21] : memref<8x8x128xf32, #tpu.memory_space<vmem>>, vector<1x8x128xf32>
    %82 = vector.shape_cast %81 : vector<1x8x128xf32> to vector<8x128xf32>
    %83 = vector.shape_cast %79 : vector<8x128xf32> to vector<1x8x128xf32>
    tpu.vector_store %arg5[%80, %c0_20, %c0_21], %83 {strides = array<i32>} : memref<8x8x128xf32, #tpu.memory_space<vmem>>, vector<1x8x128xf32>,
    %c2_i32 = arith.constant 2 : i32
    %84 = arith.index_cast %c2_i32 : i32 to index
    %c0_22 = arith.constant 0 : index
    %c0_23 = arith.constant 0 : index
    %85 = vector.load %arg2[%84, %c0_22, %c0_23] : memref<8x8x128xbf16, #tpu.memory_space<vmem>>, vector<1x8x128xbf16>
    %86 = vector.shape_cast %85 : vector<1x8x128xbf16> to vector<8x128xbf16>
    %87 = arith.extf %86 : vector<8x128xbf16> to vector<8x128xf32>
    %88 = arith.index_cast %c2_i32 : i32 to index
    %c0_24 = arith.constant 0 : index
    %c0_25 = arith.constant 0 : index
    %89 = vector.load %arg3[%88, %c0_24, %c0_25] : memref<8x8x1xf32, #tpu.memory_space<vmem>>, vector<1x8x1xf32>
    %90 = vector.shape_cast %89 : vector<1x8x1xf32> to vector<8x1xf32>
    %91 = arith.truncf %78 : vector<8x32xf32> to vector<8x32xbf16>
    %cst_26 = arith.constant dense<0.000000e+00> : vector<8x128xf32>
    %92 = tpu.matmul %91, %3, %cst_26 {dimension_numbers = #tpu.dot_dimension_numbers<[1], [0], [0], [1], [0, 0, 1, 1], [], []>} : vector<8x32xbf16>, vector<32x128xbf16>, vector<8x128xf32> -> vector<8x128xf32>
    %93 = arith.addf %92, %87 : vector<8x128xf32>
    %94 = vector.extract_strided_slice %93 {offsets = [0, 0], sizes = [8, 96], strides = [1, 1]} : vector<8x128xf32> to vector<8x96xf32>
    %95 = arith.negf %94 : vector<8x96xf32>
    %96 = math.exp %95 : vector<8x96xf32>
    %cst_27 = arith.constant 1.000000e+00 : f32
    %97 = vector.broadcast %cst_27 : f32 to vector<8x96xf32>
    %98 = arith.addf %97, %96 : vector<8x96xf32>
    %99 = arith.divf %97, %98 : vector<8x96xf32>
    %100 = vector.extract_strided_slice %93 {offsets = [0, 96], sizes = [8, 32], strides = [1, 1]} : vector<8x128xf32> to vector<8x32xf32>
    %101 = math.tanh %100 : vector<8x32xf32>
    %102 = vector.extract_strided_slice %99 {offsets = [0, 0], sizes = [8, 32], strides = [1, 1]} : vector<8x96xf32> to vector<8x32xf32>
    %103 = vector.extract_strided_slice %99 {offsets = [0, 32], sizes = [8, 32], strides = [1, 1]} : vector<8x96xf32> to vector<8x32xf32>
    %104 = vector.extract_strided_slice %99 {offsets = [0, 64], sizes = [8, 32], strides = [1, 1]} : vector<8x96xf32> to vector<8x32xf32>
    %105 = arith.mulf %102, %72 : vector<8x32xf32>
    %106 = arith.mulf %103, %101 : vector<8x32xf32>
    %107 = arith.addf %105, %106 : vector<8x32xf32>
    %108 = arith.subf %107, %72 : vector<8x32xf32>
    %109 = vector.broadcast %90 : vector<8x1xf32> to vector<8x32xf32>
    %110 = arith.mulf %109, %108 : vector<8x32xf32>
    %111 = arith.addf %72, %110 : vector<8x32xf32>
    %112 = math.tanh %111 : vector<8x32xf32>
    %113 = arith.mulf %104, %112 : vector<8x32xf32>
    %114 = arith.subf %113, %78 : vector<8x32xf32>
    %115 = vector.broadcast %90 : vector<8x1xf32> to vector<8x32xf32>
    %116 = arith.mulf %115, %114 : vector<8x32xf32>
    %117 = arith.addf %78, %116 : vector<8x32xf32>
    %118 = tpu.concatenate %117, %103, %104, %101 in 1 : vector<8x32xf32>, vector<8x32xf32>, vector<8x32xf32>, vector<8x32xf32> -> vector<8x128xf32>
    %119 = arith.index_cast %c2_i32 : i32 to index
    %c0_28 = arith.constant 0 : index
    %c0_29 = arith.constant 0 : index
    %120 = vector.load %arg5[%119, %c0_28, %c0_29] : memref<8x8x128xf32, #tpu.memory_space<vmem>>, vector<1x8x128xf32>
    %121 = vector.shape_cast %120 : vector<1x8x128xf32> to vector<8x128xf32>
    %122 = vector.shape_cast %118 : vector<8x128xf32> to vector<1x8x128xf32>
    tpu.vector_store %arg5[%119, %c0_28, %c0_29], %122 {strides = array<i32>} : memref<8x8x128xf32, #tpu.memory_space<vmem>>, vector<1x8x128xf32>,
    %c3_i32 = arith.constant 3 : i32
    %123 = arith.index_cast %c3_i32 : i32 to index
    %c0_30 = arith.constant 0 : index
    %c0_31 = arith.constant 0 : index
    %124 = vector.load %arg2[%123, %c0_30, %c0_31] : memref<8x8x128xbf16, #tpu.memory_space<vmem>>, vector<1x8x128xbf16>
    %125 = vector.shape_cast %124 : vector<1x8x128xbf16> to vector<8x128xbf16>
    %126 = arith.extf %125 : vector<8x128xbf16> to vector<8x128xf32>
    %127 = arith.index_cast %c3_i32 : i32 to index
    %c0_32 = arith.constant 0 : index
    %c0_33 = arith.constant 0 : index
    %128 = vector.load %arg3[%127, %c0_32, %c0_33] : memref<8x8x1xf32, #tpu.memory_space<vmem>>, vector<1x8x1xf32>
    %129 = vector.shape_cast %128 : vector<1x8x1xf32> to vector<8x1xf32>
    %130 = arith.truncf %117 : vector<8x32xf32> to vector<8x32xbf16>
    %cst_34 = arith.constant dense<0.000000e+00> : vector<8x128xf32>
    %131 = tpu.matmul %130, %3, %cst_34 {dimension_numbers = #tpu.dot_dimension_numbers<[1], [0], [0], [1], [0, 0, 1, 1], [], []>} : vector<8x32xbf16>, vector<32x128xbf16>, vector<8x128xf32> -> vector<8x128xf32>
    %132 = arith.addf %131, %126 : vector<8x128xf32>
    %133 = vector.extract_strided_slice %132 {offsets = [0, 0], sizes = [8, 96], strides = [1, 1]} : vector<8x128xf32> to vector<8x96xf32>
    %134 = arith.negf %133 : vector<8x96xf32>
    %135 = math.exp %134 : vector<8x96xf32>
    %cst_35 = arith.constant 1.000000e+00 : f32
    %136 = vector.broadcast %cst_35 : f32 to vector<8x96xf32>
    %137 = arith.addf %136, %135 : vector<8x96xf32>
    %138 = arith.divf %136, %137 : vector<8x96xf32>
    %139 = vector.extract_strided_slice %132 {offsets = [0, 96], sizes = [8, 32], strides = [1, 1]} : vector<8x128xf32> to vector<8x32xf32>
    %140 = math.tanh %139 : vector<8x32xf32>
    %141 = vector.extract_strided_slice %138 {offsets = [0, 0], sizes = [8, 32], strides = [1, 1]} : vector<8x96xf32> to vector<8x32xf32>
    %142 = vector.extract_strided_slice %138 {offsets = [0, 32], sizes = [8, 32], strides = [1, 1]} : vector<8x96xf32> to vector<8x32xf32>
    %143 = vector.extract_strided_slice %138 {offsets = [0, 64], sizes = [8, 32], strides = [1, 1]} : vector<8x96xf32> to vector<8x32xf32>
    %144 = arith.mulf %141, %111 : vector<8x32xf32>
    %145 = arith.mulf %142, %140 : vector<8x32xf32>
    %146 = arith.addf %144, %145 : vector<8x32xf32>
    %147 = arith.subf %146, %111 : vector<8x32xf32>
    %148 = vector.broadcast %129 : vector<8x1xf32> to vector<8x32xf32>
    %149 = arith.mulf %148, %147 : vector<8x32xf32>
    %150 = arith.addf %111, %149 : vector<8x32xf32>
    %151 = math.tanh %150 : vector<8x32xf32>
    %152 = arith.mulf %143, %151 : vector<8x32xf32>
    %153 = arith.subf %152, %117 : vector<8x32xf32>
    %154 = vector.broadcast %129 : vector<8x1xf32> to vector<8x32xf32>
    %155 = arith.mulf %154, %153 : vector<8x32xf32>
    %156 = arith.addf %117, %155 : vector<8x32xf32>
    %157 = tpu.concatenate %156, %142, %143, %140 in 1 : vector<8x32xf32>, vector<8x32xf32>, vector<8x32xf32>, vector<8x32xf32> -> vector<8x128xf32>
    %158 = arith.index_cast %c3_i32 : i32 to index
    %c0_36 = arith.constant 0 : index
    %c0_37 = arith.constant 0 : index
    %159 = vector.load %arg5[%158, %c0_36, %c0_37] : memref<8x8x128xf32, #tpu.memory_space<vmem>>, vector<1x8x128xf32>
    %160 = vector.shape_cast %159 : vector<1x8x128xf32> to vector<8x128xf32>
    %161 = vector.shape_cast %157 : vector<8x128xf32> to vector<1x8x128xf32>
    tpu.vector_store %arg5[%158, %c0_36, %c0_37], %161 {strides = array<i32>} : memref<8x8x128xf32, #tpu.memory_space<vmem>>, vector<1x8x128xf32>,
    %c4_i32 = arith.constant 4 : i32
    %162 = arith.index_cast %c4_i32 : i32 to index
    %c0_38 = arith.constant 0 : index
    %c0_39 = arith.constant 0 : index
    %163 = vector.load %arg2[%162, %c0_38, %c0_39] : memref<8x8x128xbf16, #tpu.memory_space<vmem>>, vector<1x8x128xbf16>
    %164 = vector.shape_cast %163 : vector<1x8x128xbf16> to vector<8x128xbf16>
    %165 = arith.extf %164 : vector<8x128xbf16> to vector<8x128xf32>
    %166 = arith.index_cast %c4_i32 : i32 to index
    %c0_40 = arith.constant 0 : index
    %c0_41 = arith.constant 0 : index
    %167 = vector.load %arg3[%166, %c0_40, %c0_41] : memref<8x8x1xf32, #tpu.memory_space<vmem>>, vector<1x8x1xf32>
    %168 = vector.shape_cast %167 : vector<1x8x1xf32> to vector<8x1xf32>
    %169 = arith.truncf %156 : vector<8x32xf32> to vector<8x32xbf16>
    %cst_42 = arith.constant dense<0.000000e+00> : vector<8x128xf32>
    %170 = tpu.matmul %169, %3, %cst_42 {dimension_numbers = #tpu.dot_dimension_numbers<[1], [0], [0], [1], [0, 0, 1, 1], [], []>} : vector<8x32xbf16>, vector<32x128xbf16>, vector<8x128xf32> -> vector<8x128xf32>
    %171 = arith.addf %170, %165 : vector<8x128xf32>
    %172 = vector.extract_strided_slice %171 {offsets = [0, 0], sizes = [8, 96], strides = [1, 1]} : vector<8x128xf32> to vector<8x96xf32>
    %173 = arith.negf %172 : vector<8x96xf32>
    %174 = math.exp %173 : vector<8x96xf32>
    %cst_43 = arith.constant 1.000000e+00 : f32
    %175 = vector.broadcast %cst_43 : f32 to vector<8x96xf32>
    %176 = arith.addf %175, %174 : vector<8x96xf32>
    %177 = arith.divf %175, %176 : vector<8x96xf32>
    %178 = vector.extract_strided_slice %171 {offsets = [0, 96], sizes = [8, 32], strides = [1, 1]} : vector<8x128xf32> to vector<8x32xf32>
    %179 = math.tanh %178 : vector<8x32xf32>
    %180 = vector.extract_strided_slice %177 {offsets = [0, 0], sizes = [8, 32], strides = [1, 1]} : vector<8x96xf32> to vector<8x32xf32>
    %181 = vector.extract_strided_slice %177 {offsets = [0, 32], sizes = [8, 32], strides = [1, 1]} : vector<8x96xf32> to vector<8x32xf32>
    %182 = vector.extract_strided_slice %177 {offsets = [0, 64], sizes = [8, 32], strides = [1, 1]} : vector<8x96xf32> to vector<8x32xf32>
    %183 = arith.mulf %180, %150 : vector<8x32xf32>
    %184 = arith.mulf %181, %179 : vector<8x32xf32>
    %185 = arith.addf %183, %184 : vector<8x32xf32>
    %186 = arith.subf %185, %150 : vector<8x32xf32>
    %187 = vector.broadcast %168 : vector<8x1xf32> to vector<8x32xf32>
    %188 = arith.mulf %187, %186 : vector<8x32xf32>
    %189 = arith.addf %150, %188 : vector<8x32xf32>
    %190 = math.tanh %189 : vector<8x32xf32>
    %191 = arith.mulf %182, %190 : vector<8x32xf32>
    %192 = arith.subf %191, %156 : vector<8x32xf32>
    %193 = vector.broadcast %168 : vector<8x1xf32> to vector<8x32xf32>
    %194 = arith.mulf %193, %192 : vector<8x32xf32>
    %195 = arith.addf %156, %194 : vector<8x32xf32>
    %196 = tpu.concatenate %195, %181, %182, %179 in 1 : vector<8x32xf32>, vector<8x32xf32>, vector<8x32xf32>, vector<8x32xf32> -> vector<8x128xf32>
    %197 = arith.index_cast %c4_i32 : i32 to index
    %c0_44 = arith.constant 0 : index
    %c0_45 = arith.constant 0 : index
    %198 = vector.load %arg5[%197, %c0_44, %c0_45] : memref<8x8x128xf32, #tpu.memory_space<vmem>>, vector<1x8x128xf32>
    %199 = vector.shape_cast %198 : vector<1x8x128xf32> to vector<8x128xf32>
    %200 = vector.shape_cast %196 : vector<8x128xf32> to vector<1x8x128xf32>
    tpu.vector_store %arg5[%197, %c0_44, %c0_45], %200 {strides = array<i32>} : memref<8x8x128xf32, #tpu.memory_space<vmem>>, vector<1x8x128xf32>,
    %c5_i32 = arith.constant 5 : i32
    %201 = arith.index_cast %c5_i32 : i32 to index
    %c0_46 = arith.constant 0 : index
    %c0_47 = arith.constant 0 : index
    %202 = vector.load %arg2[%201, %c0_46, %c0_47] : memref<8x8x128xbf16, #tpu.memory_space<vmem>>, vector<1x8x128xbf16>
    %203 = vector.shape_cast %202 : vector<1x8x128xbf16> to vector<8x128xbf16>
    %204 = arith.extf %203 : vector<8x128xbf16> to vector<8x128xf32>
    %205 = arith.index_cast %c5_i32 : i32 to index
    %c0_48 = arith.constant 0 : index
    %c0_49 = arith.constant 0 : index
    %206 = vector.load %arg3[%205, %c0_48, %c0_49] : memref<8x8x1xf32, #tpu.memory_space<vmem>>, vector<1x8x1xf32>
    %207 = vector.shape_cast %206 : vector<1x8x1xf32> to vector<8x1xf32>
    %208 = arith.truncf %195 : vector<8x32xf32> to vector<8x32xbf16>
    %cst_50 = arith.constant dense<0.000000e+00> : vector<8x128xf32>
    %209 = tpu.matmul %208, %3, %cst_50 {dimension_numbers = #tpu.dot_dimension_numbers<[1], [0], [0], [1], [0, 0, 1, 1], [], []>} : vector<8x32xbf16>, vector<32x128xbf16>, vector<8x128xf32> -> vector<8x128xf32>
    %210 = arith.addf %209, %204 : vector<8x128xf32>
    %211 = vector.extract_strided_slice %210 {offsets = [0, 0], sizes = [8, 96], strides = [1, 1]} : vector<8x128xf32> to vector<8x96xf32>
    %212 = arith.negf %211 : vector<8x96xf32>
    %213 = math.exp %212 : vector<8x96xf32>
    %cst_51 = arith.constant 1.000000e+00 : f32
    %214 = vector.broadcast %cst_51 : f32 to vector<8x96xf32>
    %215 = arith.addf %214, %213 : vector<8x96xf32>
    %216 = arith.divf %214, %215 : vector<8x96xf32>
    %217 = vector.extract_strided_slice %210 {offsets = [0, 96], sizes = [8, 32], strides = [1, 1]} : vector<8x128xf32> to vector<8x32xf32>
    %218 = math.tanh %217 : vector<8x32xf32>
    %219 = vector.extract_strided_slice %216 {offsets = [0, 0], sizes = [8, 32], strides = [1, 1]} : vector<8x96xf32> to vector<8x32xf32>
    %220 = vector.extract_strided_slice %216 {offsets = [0, 32], sizes = [8, 32], strides = [1, 1]} : vector<8x96xf32> to vector<8x32xf32>
    %221 = vector.extract_strided_slice %216 {offsets = [0, 64], sizes = [8, 32], strides = [1, 1]} : vector<8x96xf32> to vector<8x32xf32>
    %222 = arith.mulf %219, %189 : vector<8x32xf32>
    %223 = arith.mulf %220, %218 : vector<8x32xf32>
    %224 = arith.addf %222, %223 : vector<8x32xf32>
    %225 = arith.subf %224, %189 : vector<8x32xf32>
    %226 = vector.broadcast %207 : vector<8x1xf32> to vector<8x32xf32>
    %227 = arith.mulf %226, %225 : vector<8x32xf32>
    %228 = arith.addf %189, %227 : vector<8x32xf32>
    %229 = math.tanh %228 : vector<8x32xf32>
    %230 = arith.mulf %221, %229 : vector<8x32xf32>
    %231 = arith.subf %230, %195 : vector<8x32xf32>
    %232 = vector.broadcast %207 : vector<8x1xf32> to vector<8x32xf32>
    %233 = arith.mulf %232, %231 : vector<8x32xf32>
    %234 = arith.addf %195, %233 : vector<8x32xf32>
    %235 = tpu.concatenate %234, %220, %221, %218 in 1 : vector<8x32xf32>, vector<8x32xf32>, vector<8x32xf32>, vector<8x32xf32> -> vector<8x128xf32>
    %236 = arith.index_cast %c5_i32 : i32 to index
    %c0_52 = arith.constant 0 : index
    %c0_53 = arith.constant 0 : index
    %237 = vector.load %arg5[%236, %c0_52, %c0_53] : memref<8x8x128xf32, #tpu.memory_space<vmem>>, vector<1x8x128xf32>
    %238 = vector.shape_cast %237 : vector<1x8x128xf32> to vector<8x128xf32>
    %239 = vector.shape_cast %235 : vector<8x128xf32> to vector<1x8x128xf32>
    tpu.vector_store %arg5[%236, %c0_52, %c0_53], %239 {strides = array<i32>} : memref<8x8x128xf32, #tpu.memory_space<vmem>>, vector<1x8x128xf32>,
    %c6_i32 = arith.constant 6 : i32
    %240 = arith.index_cast %c6_i32 : i32 to index
    %c0_54 = arith.constant 0 : index
    %c0_55 = arith.constant 0 : index
    %241 = vector.load %arg2[%240, %c0_54, %c0_55] : memref<8x8x128xbf16, #tpu.memory_space<vmem>>, vector<1x8x128xbf16>
    %242 = vector.shape_cast %241 : vector<1x8x128xbf16> to vector<8x128xbf16>
    %243 = arith.extf %242 : vector<8x128xbf16> to vector<8x128xf32>
    %244 = arith.index_cast %c6_i32 : i32 to index
    %c0_56 = arith.constant 0 : index
    %c0_57 = arith.constant 0 : index
    %245 = vector.load %arg3[%244, %c0_56, %c0_57] : memref<8x8x1xf32, #tpu.memory_space<vmem>>, vector<1x8x1xf32>
    %246 = vector.shape_cast %245 : vector<1x8x1xf32> to vector<8x1xf32>
    %247 = arith.truncf %234 : vector<8x32xf32> to vector<8x32xbf16>
    %cst_58 = arith.constant dense<0.000000e+00> : vector<8x128xf32>
    %248 = tpu.matmul %247, %3, %cst_58 {dimension_numbers = #tpu.dot_dimension_numbers<[1], [0], [0], [1], [0, 0, 1, 1], [], []>} : vector<8x32xbf16>, vector<32x128xbf16>, vector<8x128xf32> -> vector<8x128xf32>
    %249 = arith.addf %248, %243 : vector<8x128xf32>
    %250 = vector.extract_strided_slice %249 {offsets = [0, 0], sizes = [8, 96], strides = [1, 1]} : vector<8x128xf32> to vector<8x96xf32>
    %251 = arith.negf %250 : vector<8x96xf32>
    %252 = math.exp %251 : vector<8x96xf32>
    %cst_59 = arith.constant 1.000000e+00 : f32
    %253 = vector.broadcast %cst_59 : f32 to vector<8x96xf32>
    %254 = arith.addf %253, %252 : vector<8x96xf32>
    %255 = arith.divf %253, %254 : vector<8x96xf32>
    %256 = vector.extract_strided_slice %249 {offsets = [0, 96], sizes = [8, 32], strides = [1, 1]} : vector<8x128xf32> to vector<8x32xf32>
    %257 = math.tanh %256 : vector<8x32xf32>
    %258 = vector.extract_strided_slice %255 {offsets = [0, 0], sizes = [8, 32], strides = [1, 1]} : vector<8x96xf32> to vector<8x32xf32>
    %259 = vector.extract_strided_slice %255 {offsets = [0, 32], sizes = [8, 32], strides = [1, 1]} : vector<8x96xf32> to vector<8x32xf32>
    %260 = vector.extract_strided_slice %255 {offsets = [0, 64], sizes = [8, 32], strides = [1, 1]} : vector<8x96xf32> to vector<8x32xf32>
    %261 = arith.mulf %258, %228 : vector<8x32xf32>
    %262 = arith.mulf %259, %257 : vector<8x32xf32>
    %263 = arith.addf %261, %262 : vector<8x32xf32>
    %264 = arith.subf %263, %228 : vector<8x32xf32>
    %265 = vector.broadcast %246 : vector<8x1xf32> to vector<8x32xf32>
    %266 = arith.mulf %265, %264 : vector<8x32xf32>
    %267 = arith.addf %228, %266 : vector<8x32xf32>
    %268 = math.tanh %267 : vector<8x32xf32>
    %269 = arith.mulf %260, %268 : vector<8x32xf32>
    %270 = arith.subf %269, %234 : vector<8x32xf32>
    %271 = vector.broadcast %246 : vector<8x1xf32> to vector<8x32xf32>
    %272 = arith.mulf %271, %270 : vector<8x32xf32>
    %273 = arith.addf %234, %272 : vector<8x32xf32>
    %274 = tpu.concatenate %273, %259, %260, %257 in 1 : vector<8x32xf32>, vector<8x32xf32>, vector<8x32xf32>, vector<8x32xf32> -> vector<8x128xf32>
    %275 = arith.index_cast %c6_i32 : i32 to index
    %c0_60 = arith.constant 0 : index
    %c0_61 = arith.constant 0 : index
    %276 = vector.load %arg5[%275, %c0_60, %c0_61] : memref<8x8x128xf32, #tpu.memory_space<vmem>>, vector<1x8x128xf32>
    %277 = vector.shape_cast %276 : vector<1x8x128xf32> to vector<8x128xf32>
    %278 = vector.shape_cast %274 : vector<8x128xf32> to vector<1x8x128xf32>
    tpu.vector_store %arg5[%275, %c0_60, %c0_61], %278 {strides = array<i32>} : memref<8x8x128xf32, #tpu.memory_space<vmem>>, vector<1x8x128xf32>,
    %c7_i32 = arith.constant 7 : i32
    %279 = arith.index_cast %c7_i32 : i32 to index
    %c0_62 = arith.constant 0 : index
    %c0_63 = arith.constant 0 : index
    %280 = vector.load %arg2[%279, %c0_62, %c0_63] : memref<8x8x128xbf16, #tpu.memory_space<vmem>>, vector<1x8x128xbf16>
    %281 = vector.shape_cast %280 : vector<1x8x128xbf16> to vector<8x128xbf16>
    %282 = arith.extf %281 : vector<8x128xbf16> to vector<8x128xf32>
    %283 = arith.index_cast %c7_i32 : i32 to index
    %c0_64 = arith.constant 0 : index
    %c0_65 = arith.constant 0 : index
    %284 = vector.load %arg3[%283, %c0_64, %c0_65] : memref<8x8x1xf32, #tpu.memory_space<vmem>>, vector<1x8x1xf32>
    %285 = vector.shape_cast %284 : vector<1x8x1xf32> to vector<8x1xf32>
    %286 = arith.truncf %273 : vector<8x32xf32> to vector<8x32xbf16>
    %cst_66 = arith.constant dense<0.000000e+00> : vector<8x128xf32>
    %287 = tpu.matmul %286, %3, %cst_66 {dimension_numbers = #tpu.dot_dimension_numbers<[1], [0], [0], [1], [0, 0, 1, 1], [], []>} : vector<8x32xbf16>, vector<32x128xbf16>, vector<8x128xf32> -> vector<8x128xf32>
    %288 = arith.addf %287, %282 : vector<8x128xf32>
    %289 = vector.extract_strided_slice %288 {offsets = [0, 0], sizes = [8, 96], strides = [1, 1]} : vector<8x128xf32> to vector<8x96xf32>
    %290 = arith.negf %289 : vector<8x96xf32>
    %291 = math.exp %290 : vector<8x96xf32>
    %cst_67 = arith.constant 1.000000e+00 : f32
    %292 = vector.broadcast %cst_67 : f32 to vector<8x96xf32>
    %293 = arith.addf %292, %291 : vector<8x96xf32>
    %294 = arith.divf %292, %293 : vector<8x96xf32>
    %295 = vector.extract_strided_slice %288 {offsets = [0, 96], sizes = [8, 32], strides = [1, 1]} : vector<8x128xf32> to vector<8x32xf32>
    %296 = math.tanh %295 : vector<8x32xf32>
    %297 = vector.extract_strided_slice %294 {offsets = [0, 0], sizes = [8, 32], strides = [1, 1]} : vector<8x96xf32> to vector<8x32xf32>
    %298 = vector.extract_strided_slice %294 {offsets = [0, 32], sizes = [8, 32], strides = [1, 1]} : vector<8x96xf32> to vector<8x32xf32>
    %299 = vector.extract_strided_slice %294 {offsets = [0, 64], sizes = [8, 32], strides = [1, 1]} : vector<8x96xf32> to vector<8x32xf32>
    %300 = arith.mulf %297, %267 : vector<8x32xf32>
    %301 = arith.mulf %298, %296 : vector<8x32xf32>
    %302 = arith.addf %300, %301 : vector<8x32xf32>
    %303 = arith.subf %302, %267 : vector<8x32xf32>
    %304 = vector.broadcast %285 : vector<8x1xf32> to vector<8x32xf32>
    %305 = arith.mulf %304, %303 : vector<8x32xf32>
    %306 = arith.addf %267, %305 : vector<8x32xf32>
    %307 = math.tanh %306 : vector<8x32xf32>
    %308 = arith.mulf %299, %307 : vector<8x32xf32>
    %309 = arith.subf %308, %273 : vector<8x32xf32>
    %310 = vector.broadcast %285 : vector<8x1xf32> to vector<8x32xf32>
    %311 = arith.mulf %310, %309 : vector<8x32xf32>
    %312 = arith.addf %273, %311 : vector<8x32xf32>
    %313 = tpu.concatenate %312, %298, %299, %296 in 1 : vector<8x32xf32>, vector<8x32xf32>, vector<8x32xf32>, vector<8x32xf32> -> vector<8x128xf32>
    %314 = arith.index_cast %c7_i32 : i32 to index
    %c0_68 = arith.constant 0 : index
    %c0_69 = arith.constant 0 : index
    %315 = vector.load %arg5[%314, %c0_68, %c0_69] : memref<8x8x128xf32, #tpu.memory_space<vmem>>, vector<1x8x128xf32>
    %316 = vector.shape_cast %315 : vector<1x8x128xf32> to vector<8x128xf32>
    %317 = vector.shape_cast %313 : vector<8x128xf32> to vector<1x8x128xf32>
    tpu.vector_store %arg5[%314, %c0_68, %c0_69], %317 {strides = array<i32>} : memref<8x8x128xf32, #tpu.memory_space<vmem>>, vector<1x8x128xf32>,
    %c8_i32 = arith.constant 8 : i32
    %c0_70 = arith.constant 0 : index
    %c0_71 = arith.constant 0 : index
    %318 = vector.load %arg6[%c0_70, %c0_71] : memref<8x32xf32, #tpu.memory_space<vmem>>, vector<8x32xf32>
    tpu.vector_store %arg6[%c0_70, %c0_71], %312 {strides = array<i32>} : memref<8x32xf32, #tpu.memory_space<vmem>>, vector<8x32xf32>,
    %c0_72 = arith.constant 0 : index
    %c0_73 = arith.constant 0 : index
    %319 = vector.load %arg7[%c0_72, %c0_73] : memref<8x32xf32, #tpu.memory_space<vmem>>, vector<8x32xf32>
    tpu.vector_store %arg7[%c0_72, %c0_73], %306 {strides = array<i32>} : memref<8x32xf32, #tpu.memory_space<vmem>>, vector<8x32xf32>,
    return
  }
  func.func @transform_0(%arg0: i32, %arg1: i32) -> (i32, i32, i32) {
    %c0_i32 = arith.constant 0 : i32
    %c0_i32_0 = arith.constant 0 : i32
    return %arg1, %arg0, %c0_i32 : i32, i32, i32
  }
  func.func @transform_1(%arg0: i32, %arg1: i32) -> (i32, i32, i32) {
    %c0_i32 = arith.constant 0 : i32
    %c0_i32_0 = arith.constant 0 : i32
    return %arg1, %arg0, %c0_i32 : i32, i32, i32
  }
  func.func @transform_2(%arg0: i32, %arg1: i32) -> (i32, i32) {
    %c0_i32 = arith.constant 0 : i32
    %c0_i32_0 = arith.constant 0 : i32
    %c0_i32_1 = arith.constant 0 : i32
    return %c0_i32, %c0_i32_0 : i32, i32
  }
  func.func @transform_3(%arg0: i32, %arg1: i32) -> (i32, i32, i32) {
    %c0_i32 = arith.constant 0 : i32
    %c0_i32_0 = arith.constant 0 : i32
    return %arg1, %arg0, %c0_i32 : i32, i32, i32
  }
}

</mosaic_0001>

<llo_original>
// kernel: lstm_forward.1
$region0: #{lstm_forward.1}
  #allocation0 [shape = 'u32[]', space=smem, size = 0x4, offset = 0x4, fixed_abs, tag = 'smem constant byte address 0x4 - core index']
  #allocation1 [shape = 'u32[72,128]{1,0:T(1,128)}', space=vmem, size = 0x9000, scoped, tag = 'internal scratch']
  #allocation2 [shape = 'f32[8,32]{1,0:T(8,128)}', space=vmem, size = 0x1000, scoped, tag = 'scratch operand']
  #allocation3 [shape = 'f32[8,32]{1,0:T(8,128)}', space=vmem, size = 0x1000, scoped, tag = 'scratch operand']
  %s0 = inlined_call_operand.vmem [shape: bf16[8,8,128], index: 0, kind: input, shape index: {}]
  %s1 = inlined_call_operand.vmem [shape: f32[8,8,1], index: 1, kind: input, shape index: {}]
  %s2 = inlined_call_operand.vmem [shape: bf16[32,128], index: 2, kind: input, shape index: {}]
  %s3 = inlined_call_operand.vmem [shape: f32[8,8,128], index: 3, kind: output, shape index: {}]
  %s4 = sld [smem:[#allocation0]]
  $region26: #{lstm_forward.1} parent=0
    _
  %s6 = ssub.s32 1, %s4
  %s7 = scalar_select 0, %s6, %s4
  // Predicated region
  $region2: #{lstm_forward.1} parent=0 // pred_check
    _
  $region3: #{lstm_forward.1} parent=0 // pred_check_branch
    %9 = sbr.rel (0) target = $region5
  $region4: #{lstm_forward.1} parent=0 // pred_region
    _
  $region5: #{lstm_forward.1} parent=0 // pred_fallthru
    _
  // Predicated region
  $region6: #{lstm_forward.1} parent=0 // pred_check
    _
  $region7: #{lstm_forward.1} parent=0 // pred_check_branch
    %11 = sbr.rel (0) target = $region9
  $region8: #{lstm_forward.1} parent=0 // pred_region
    _
  $region9: #{lstm_forward.1} parent=0 // pred_fallthru
    _
  // Predicated region
  $region10: #{lstm_forward.1} parent=0 // pred_check
    _
  $region11: #{lstm_forward.1} parent=0 // pred_check_branch
    %13 = sbr.rel (0) target = $region13
  $region12: #{lstm_forward.1} parent=0 // pred_region
    _
  $region13: #{lstm_forward.1} parent=0 // pred_fallthru
    _
  %p15 = scmp.eq.s32.totalorder 0, 0
  // Predicated region
  $region14: #{lstm_forward.1} parent=0 // pred_check
    %p16 = pneg %p15
  $region15: #{lstm_forward.1} parent=0 // pred_check_branch
    %18 = sbr.rel (%p16) target = $region17
  $region16: #{lstm_forward.1} parent=0 // pred_region
    %vm19 = vcmask 261120
    %20 = vst.msk [vmem:[#allocation2] sm:$0xff] %vm19, 0.0
    %21 = vst.msk [vmem:[#allocation3] sm:$0xff] %vm19, 0.0
  $region17: #{lstm_forward.1} parent=0 // pred_fallthru
    _
  %v22 = vld [vmem:[%s2] sm:$0xf]
  %v23 = vld [vmem:[%s2 + $0x4] sm:$0xf]
  %v24 = vld [vmem:[%s2 + $0x8] sm:$0xf]
  %v25 = vld [vmem:[%s2 + $0xc] sm:$0xf]
  %v26 = vld [vmem:[#allocation2] sm:$0xff]
  %v27 = vld [vmem:[#allocation3] sm:$0xff]
  %v28 = vld [vmem:[%s0] sm:$0xf]
  %v29 = vunpack.c.l.bf16 %v28
  %v30 = vld [vmem:[%s1] sm:$0xff]
  %v31 = vpack.c.bf16 %v26, %v26
  %v36 = vunpack.c.l.b16 %v22
  %v37 = vunpack.c.l.b16 %v23
  %v38 = vunpack.c.l.b16 %v24
  %v39 = vunpack.c.l.b16 %v25
  %v40 = vpack.c.b16 %v37, %v36
  %v41 = vpack.c.b16 %v39, %v38
  %vm44 = vcmask 261120
  %v46 = vsel %vm44, %v31, 0
  %48 = vmatpush.bf16.msra.mxu0 0
  %49 = vmatpush.bf16.msra.mxu0 0
  %50 = vmatpush.bf16.msra.mxu0 0
  %51 = vmatpush.bf16.msra.mxu0 0
  %52 = vmatpush.bf16.msra.mxu0 0
  %53 = vmatpush.bf16.msra.mxu0 0
  %54 = vmatpush.bf16.msra.mxu0 %v41
  %55 = vmatpush.bf16.msra.mxu0 %v40
  %56 = vmatmul.bf16.gmra.mxu0 %v46
  %v57 = vpop.f32.mrf.mxu0
  %v58 = vadd.f32 %v29, %v57
  %v59 = vpop.f32.mrf.mxu0
  %60 = vdwg.mxu0
  %v61 = vxor.u32 %v58, 2147483648
  %v62 = vmul.f32 %v61, 1.442695
  %v63 = vpow.pop %v62
  %v64 = vadd.f32 %v63, 1.0
  %v65 = vrcp.pop %v64
  %v66 = vmul.f32 %v64, %v65
  %v67 = vsub.f32 1.0, %v66
  %v68 = vmul.f32 %v65, %v67
  %v69 = vadd.f32 %v65, %v68
  %vm70 = vweird.f32 %v64
  %vm71 = vweird.f32 %v65
  %vm72 = vmor %vm70, %vm71
  %v73 = vsel %vm72, %v65, %v69
  %v74 = vand.u32 2147483647, %v64
  %vm75 = vcmp.eq.f32.partialorder %v74, 8.507059e+37
  %v76 = vand.u32 %v64, 2147483648
  %v77 = vor.u32 1.1754944e-38, %v76
  %v78 = vsel %vm75, %v77, %v73
  %v79 = vmul.f32 1.0, %v78
  %v80 = vtanh.pop %v58
  %v81 = vmul.f32 %v79, %v27
  %83 = vrot.lane.b32.xlu0 %v80, 64
  %v84 = vpop.permute.xlu0 %83
  %v86 = vmul.f32 %v79, %v84
  %88 = vrot.lane.b32.xlu0 %v86, 96
  %v89 = vpop.permute.xlu0 %88
  %v91 = vadd.f32 %v81, %v89
  %v92 = vsub.f32 %v91, %v27
  %94 = vset.pattern.permute.xlu0 0
  %95 = vperm.xlu0 %94, %v30
  %v96 = vpop.permute.xlu0 %95
  %v98 = vmul.f32 %v96, %v92
  %v99 = vadd.f32 %v27, %v98
  %v100 = vtanh.pop %v99
  %102 = vrot.lane.b32.xlu0 %v100, 64
  %v103 = vpop.permute.xlu0 %102
  %v105 = vmul.f32 %v79, %v103
  %107 = vrot.lane.b32.xlu0 %v26, 64
  %v108 = vpop.permute.xlu0 %107
  %v110 = vsub.f32 %v105, %v108
  %v111 = vmul.f32 %v96, %v110
  %113 = vrot.lane.b32.xlu0 %v111, 64
  %v114 = vpop.permute.xlu0 %113
  %v116 = vadd.f32 %v26, %v114
  %v117 = vsel %vm44, %v116, %v79
  %vm118 = vcmask 523264
  %v119 = vsel %vm118, %v117, %v79
  %vm120 = vcmask 785408
  %v121 = vsel %vm120, %v119, %v80
  %122 = vst [vmem:[%s3] sm:$0xff] %v121
  %s123 = scalar_lea.vmem %s0, 4
  %v124 = vld [vmem:[%s123] sm:$0xf]
  %v125 = vunpack.c.l.bf16 %v124
  %s126 = scalar_lea.vmem %s1, 8
  %v127 = vld [vmem:[%s126] sm:$0xff]
  %v128 = vpack.c.bf16 %v116, %v116
  %v130 = vsel %vm44, %v128, 0
  %132 = vmatpush.bf16.msra.mxu0 0
  %133 = vmatpush.bf16.msra.mxu0 0
  %134 = vmatpush.bf16.msra.mxu0 0
  %135 = vmatpush.bf16.msra.mxu0 0
  %136 = vmatpush.bf16.msra.mxu0 0
  %137 = vmatpush.bf16.msra.mxu0 0
  %138 = vmatpush.bf16.msra.mxu0 %v41
  %139 = vmatpush.bf16.msra.mxu0 %v40
  %140 = vmatmul.bf16.gmra.mxu0 %v130
  %v141 = vpop.f32.mrf.mxu0
  %v142 = vadd.f32 %v125, %v141
  %v143 = vpop.f32.mrf.mxu0
  %144 = vdwg.mxu0
  %v145 = vxor.u32 %v142, 2147483648
  %v146 = vmul.f32 %v145, 1.442695
  %v147 = vpow.pop %v146
  %v148 = vadd.f32 %v147, 1.0
  %v149 = vrcp.pop %v148
  %v150 = vmul.f32 %v148, %v149
  %v151 = vsub.f32 1.0, %v150
  %v152 = vmul.f32 %v149, %v151
  %v153 = vadd.f32 %v149, %v152
  %vm154 = vweird.f32 %v148
  %vm155 = vweird.f32 %v149
  %vm156 = vmor %vm154, %vm155
  %v157 = vsel %vm156, %v149, %v153
  %v158 = vand.u32 2147483647, %v148
  %vm159 = vcmp.eq.f32.partialorder %v158, 8.507059e+37
  %v160 = vand.u32 %v148, 2147483648
  %v161 = vor.u32 1.1754944e-38, %v160
  %v162 = vsel %vm159, %v161, %v157
  %v163 = vmul.f32 1.0, %v162
  %v164 = vtanh.pop %v142
  %v165 = vmul.f32 %v163, %v99
  %167 = vrot.lane.b32.xlu0 %v164, 64
  %v168 = vpop.permute.xlu0 %167
  %v170 = vmul.f32 %v163, %v168
  %172 = vrot.lane.b32.xlu0 %v170, 96
  %v173 = vpop.permute.xlu0 %172
  %v175 = vadd.f32 %v165, %v173
  %v176 = vsub.f32 %v175, %v99
  %178 = vset.pattern.permute.xlu0 0
  %179 = vperm.xlu0 %178, %v127
  %v180 = vpop.permute.xlu0 %179
  %v182 = vmul.f32 %v180, %v176
  %v183 = vadd.f32 %v99, %v182
  %v184 = vtanh.pop %v183
  %186 = vrot.lane.b32.xlu0 %v184, 64
  %v187 = vpop.permute.xlu0 %186
  %v189 = vmul.f32 %v163, %v187
  %191 = vrot.lane.b32.xlu0 %v116, 64
  %v192 = vpop.permute.xlu0 %191
  %v194 = vsub.f32 %v189, %v192
  %v195 = vmul.f32 %v180, %v194
  %197 = vrot.lane.b32.xlu0 %v195, 64
  %v198 = vpop.permute.xlu0 %197
  %v200 = vadd.f32 %v116, %v198
  %v201 = vsel %vm44, %v200, %v163
  %v202 = vsel %vm118, %v201, %v163
  %v203 = vsel %vm120, %v202, %v164
  %s204 = scalar_lea.vmem %s3, 8
  %205 = vst [vmem:[%s204] sm:$0xff] %v203
  %s206 = scalar_lea.vmem %s0, 8
  %v207 = vld [vmem:[%s206] sm:$0xf]
  %v208 = vunpack.c.l.bf16 %v207
  %s209 = scalar_lea.vmem %s1, 16
  %v210 = vld [vmem:[%s209] sm:$0xff]
  %v211 = vpack.c.bf16 %v200, %v200
  %v213 = vsel %vm44, %v211, 0
  %215 = vmatpush.bf16.msra.mxu0 0
  %216 = vmatpush.bf16.msra.mxu0 0
  %217 = vmatpush.bf16.msra.mxu0 0
  %218 = vmatpush.bf16.msra.mxu0 0
  %219 = vmatpush.bf16.msra.mxu0 0
  %220 = vmatpush.bf16.msra.mxu0 0
  %221 = vmatpush.bf16.msra.mxu0 %v41
  %222 = vmatpush.bf16.msra.mxu0 %v40
  %223 = vmatmul.bf16.gmra.mxu0 %v213
  %v224 = vpop.f32.mrf.mxu0
  %v225 = vadd.f32 %v208, %v224
  %v226 = vpop.f32.mrf.mxu0
  %227 = vdwg.mxu0
  %v228 = vxor.u32 %v225, 2147483648
  %v229 = vmul.f32 %v228, 1.442695
  %v230 = vpow.pop %v229
  %v231 = vadd.f32 %v230, 1.0
  %v232 = vrcp.pop %v231
  %v233 = vmul.f32 %v231, %v232
  %v234 = vsub.f32 1.0, %v233
  %v235 = vmul.f32 %v232, %v234
  %v236 = vadd.f32 %v232, %v235
  %vm237 = vweird.f32 %v231
  %vm238 = vweird.f32 %v232
  %vm239 = vmor %vm237, %vm238
  %v240 = vsel %vm239, %v232, %v236
  %v241 = vand.u32 2147483647, %v231
  %vm242 = vcmp.eq.f32.partialorder %v241, 8.507059e+37
  %v243 = vand.u32 %v231, 2147483648
  %v244 = vor.u32 1.1754944e-38, %v243
  %v245 = vsel %vm242, %v244, %v240
  %v246 = vmul.f32 1.0, %v245
  %v247 = vtanh.pop %v225
  %v248 = vmul.f32 %v246, %v183
  %250 = vrot.lane.b32.xlu0 %v247, 64
  %v251 = vpop.permute.xlu0 %250
  %v253 = vmul.f32 %v246, %v251
  %255 = vrot.lane.b32.xlu0 %v253, 96
  %v256 = vpop.permute.xlu0 %255
  %v258 = vadd.f32 %v248, %v256
  %v259 = vsub.f32 %v258, %v183
  %261 = vset.pattern.permute.xlu0 0
  %262 = vperm.xlu0 %261, %v210
  %v263 = vpop.permute.xlu0 %262
  %v265 = vmul.f32 %v263, %v259
  %v266 = vadd.f32 %v183, %v265
  %v267 = vtanh.pop %v266
  %269 = vrot.lane.b32.xlu0 %v267, 64
  %v270 = vpop.permute.xlu0 %269
  %v272 = vmul.f32 %v246, %v270
  %274 = vrot.lane.b32.xlu0 %v200, 64
  %v275 = vpop.permute.xlu0 %274
  %v277 = vsub.f32 %v272, %v275
  %v278 = vmul.f32 %v263, %v277
  %280 = vrot.lane.b32.xlu0 %v278, 64
  %v281 = vpop.permute.xlu0 %280
  %v283 = vadd.f32 %v200, %v281
  %v284 = vsel %vm44, %v283, %v246
  %v285 = vsel %vm118, %v284, %v246
  %v286 = vsel %vm120, %v285, %v247
  %s287 = scalar_lea.vmem %s3, 16
  %288 = vst [vmem:[%s287] sm:$0xff] %v286
  %s289 = scalar_lea.vmem %s0, 12
  %v290 = vld [vmem:[%s289] sm:$0xf]
  %v291 = vunpack.c.l.bf16 %v290
  %s292 = scalar_lea.vmem %s1, 24
  %v293 = vld [vmem:[%s292] sm:$0xff]
  %v294 = vpack.c.bf16 %v283, %v283
  %v296 = vsel %vm44, %v294, 0
  %298 = vmatpush.bf16.msra.mxu0 0
  %299 = vmatpush.bf16.msra.mxu0 0
  %300 = vmatpush.bf16.msra.mxu0 0
  %301 = vmatpush.bf16.msra.mxu0 0
  %302 = vmatpush.bf16.msra.mxu0 0
  %303 = vmatpush.bf16.msra.mxu0 0
  %304 = vmatpush.bf16.msra.mxu0 %v41
  %305 = vmatpush.bf16.msra.mxu0 %v40
  %306 = vmatmul.bf16.gmra.mxu0 %v296
  %v307 = vpop.f32.mrf.mxu0
  %v308 = vadd.f32 %v291, %v307
  %v309 = vpop.f32.mrf.mxu0
  %310 = vdwg.mxu0
  %v311 = vxor.u32 %v308, 2147483648
  %v312 = vmul.f32 %v311, 1.442695
  %v313 = vpow.pop %v312
  %v314 = vadd.f32 %v313, 1.0
  %v315 = vrcp.pop %v314
  %v316 = vmul.f32 %v314, %v315
  %v317 = vsub.f32 1.0, %v316
  %v318 = vmul.f32 %v315, %v317
  %v319 = vadd.f32 %v315, %v318
  %vm320 = vweird.f32 %v314
  %vm321 = vweird.f32 %v315
  %vm322 = vmor %vm320, %vm321
  %v323 = vsel %vm322, %v315, %v319
  %v324 = vand.u32 2147483647, %v314
  %vm325 = vcmp.eq.f32.partialorder %v324, 8.507059e+37
  %v326 = vand.u32 %v314, 2147483648
  %v327 = vor.u32 1.1754944e-38, %v326
  %v328 = vsel %vm325, %v327, %v323
  %v329 = vmul.f32 1.0, %v328
  %v330 = vtanh.pop %v308
  %v331 = vmul.f32 %v329, %v266
  %333 = vrot.lane.b32.xlu0 %v330, 64
  %v334 = vpop.permute.xlu0 %333
  %v336 = vmul.f32 %v329, %v334
  %338 = vrot.lane.b32.xlu0 %v336, 96
  %v339 = vpop.permute.xlu0 %338
  %v341 = vadd.f32 %v331, %v339
  %v342 = vsub.f32 %v341, %v266
  %344 = vset.pattern.permute.xlu0 0
  %345 = vperm.xlu0 %344, %v293
  %v346 = vpop.permute.xlu0 %345
  %v348 = vmul.f32 %v346, %v342
  %v349 = vadd.f32 %v266, %v348
  %v350 = vtanh.pop %v349
  %352 = vrot.lane.b32.xlu0 %v350, 64
  %v353 = vpop.permute.xlu0 %352
  %v355 = vmul.f32 %v329, %v353
  %357 = vrot.lane.b32.xlu0 %v283, 64
  %v358 = vpop.permute.xlu0 %357
  %v360 = vsub.f32 %v355, %v358
  %v361 = vmul.f32 %v346, %v360
  %363 = vrot.lane.b32.xlu0 %v361, 64
  %v364 = vpop.permute.xlu0 %363
  %v366 = vadd.f32 %v283, %v364
  %v367 = vsel %vm44, %v366, %v329
  %v368 = vsel %vm118, %v367, %v329
  %v369 = vsel %vm120, %v368, %v330
  %s370 = scalar_lea.vmem %s3, 24
  %371 = vst [vmem:[%s370] sm:$0xff] %v369
  %s372 = scalar_lea.vmem %s0, 16
  %v373 = vld [vmem:[%s372] sm:$0xf]
  %v374 = vunpack.c.l.bf16 %v373
  %s375 = scalar_lea.vmem %s1, 32
  %v376 = vld [vmem:[%s375] sm:$0xff]
  %v377 = vpack.c.bf16 %v366, %v366
  %v379 = vsel %vm44, %v377, 0
  %381 = vmatpush.bf16.msra.mxu0 0
  %382 = vmatpush.bf16.msra.mxu0 0
  %383 = vmatpush.bf16.msra.mxu0 0
  %384 = vmatpush.bf16.msra.mxu0 0
  %385 = vmatpush.bf16.msra.mxu0 0
  %386 = vmatpush.bf16.msra.mxu0 0
  %387 = vmatpush.bf16.msra.mxu0 %v41
  %388 = vmatpush.bf16.msra.mxu0 %v40
  %389 = vmatmul.bf16.gmra.mxu0 %v379
  %v390 = vpop.f32.mrf.mxu0
  %v391 = vadd.f32 %v374, %v390
  %v392 = vpop.f32.mrf.mxu0
  %393 = vdwg.mxu0
  %v394 = vxor.u32 %v391, 2147483648
  %v395 = vmul.f32 %v394, 1.442695
  %v396 = vpow.pop %v395
  %v397 = vadd.f32 %v396, 1.0
  %v398 = vrcp.pop %v397
  %v399 = vmul.f32 %v397, %v398
  %v400 = vsub.f32 1.0, %v399
  %v401 = vmul.f32 %v398, %v400
  %v402 = vadd.f32 %v398, %v401
  %vm403 = vweird.f32 %v397
  %vm404 = vweird.f32 %v398
  %vm405 = vmor %vm403, %vm404
  %v406 = vsel %vm405, %v398, %v402
  %v407 = vand.u32 2147483647, %v397
  %vm408 = vcmp.eq.f32.partialorder %v407, 8.507059e+37
  %v409 = vand.u32 %v397, 2147483648
  %v410 = vor.u32 1.1754944e-38, %v409
  %v411 = vsel %vm408, %v410, %v406
  %v412 = vmul.f32 1.0, %v411
  %v413 = vtanh.pop %v391
  %v414 = vmul.f32 %v412, %v349
  %416 = vrot.lane.b32.xlu0 %v413, 64
  %v417 = vpop.permute.xlu0 %416
  %v419 = vmul.f32 %v412, %v417
  %421 = vrot.lane.b32.xlu0 %v419, 96
  %v422 = vpop.permute.xlu0 %421
  %v424 = vadd.f32 %v414, %v422
  %v425 = vsub.f32 %v424, %v349
  %427 = vset.pattern.permute.xlu0 0
  %428 = vperm.xlu0 %427, %v376
  %v429 = vpop.permute.xlu0 %428
  %v431 = vmul.f32 %v429, %v425
  %v432 = vadd.f32 %v349, %v431
  %v433 = vtanh.pop %v432
  %435 = vrot.lane.b32.xlu0 %v433, 64
  %v436 = vpop.permute.xlu0 %435
  %v438 = vmul.f32 %v412, %v436
  %440 = vrot.lane.b32.xlu0 %v366, 64
  %v441 = vpop.permute.xlu0 %440
  %v443 = vsub.f32 %v438, %v441
  %v444 = vmul.f32 %v429, %v443
  %446 = vrot.lane.b32.xlu0 %v444, 64
  %v447 = vpop.permute.xlu0 %446
  %v449 = vadd.f32 %v366, %v447
  %v450 = vsel %vm44, %v449, %v412
  %v451 = vsel %vm118, %v450, %v412
  %v452 = vsel %vm120, %v451, %v413
  %s453 = scalar_lea.vmem %s3, 32
  %454 = vst [vmem:[%s453] sm:$0xff] %v452
  %s455 = scalar_lea.vmem %s0, 20
  %v456 = vld [vmem:[%s455] sm:$0xf]
  %v457 = vunpack.c.l.bf16 %v456
  %s458 = scalar_lea.vmem %s1, 40
  %v459 = vld [vmem:[%s458] sm:$0xff]
  %v460 = vpack.c.bf16 %v449, %v449
  %v462 = vsel %vm44, %v460, 0
  %464 = vmatpush.bf16.msra.mxu0 0
  %465 = vmatpush.bf16.msra.mxu0 0
  %466 = vmatpush.bf16.msra.mxu0 0
  %467 = vmatpush.bf16.msra.mxu0 0
  %468 = vmatpush.bf16.msra.mxu0 0
  %469 = vmatpush.bf16.msra.mxu0 0
  %470 = vmatpush.bf16.msra.mxu0 %v41
  %471 = vmatpush.bf16.msra.mxu0 %v40
  %472 = vmatmul.bf16.gmra.mxu0 %v462
  %v473 = vpop.f32.mrf.mxu0
  %v474 = vadd.f32 %v457, %v473
  %v475 = vpop.f32.mrf.mxu0
  %476 = vdwg.mxu0
  %v477 = vxor.u32 %v474, 2147483648
  %v478 = vmul.f32 %v477, 1.442695
  %v479 = vpow.pop %v478
  %v480 = vadd.f32 %v479, 1.0
  %v481 = vrcp.pop %v480
  %v482 = vmul.f32 %v480, %v481
  %v483 = vsub.f32 1.0, %v482
  %v484 = vmul.f32 %v481, %v483
  %v485 = vadd.f32 %v481, %v484
  %vm486 = vweird.f32 %v480
  %vm487 = vweird.f32 %v481
  %vm488 = vmor %vm486, %vm487
  %v489 = vsel %vm488, %v481, %v485
  %v490 = vand.u32 2147483647, %v480
  %vm491 = vcmp.eq.f32.partialorder %v490, 8.507059e+37
  %v492 = vand.u32 %v480, 2147483648
  %v493 = vor.u32 1.1754944e-38, %v492
  %v494 = vsel %vm491, %v493, %v489
  %v495 = vmul.f32 1.0, %v494
  %v496 = vtanh.pop %v474
  %v497 = vmul.f32 %v495, %v432
  %499 = vrot.lane.b32.xlu0 %v496, 64
  %v500 = vpop.permute.xlu0 %499
  %v502 = vmul.f32 %v495, %v500
  %504 = vrot.lane.b32.xlu0 %v502, 96
  %v505 = vpop.permute.xlu0 %504
  %v507 = vadd.f32 %v497, %v505
  %v508 = vsub.f32 %v507, %v432
  %510 = vset.pattern.permute.xlu0 0
  %511 = vperm.xlu0 %510, %v459
  %v512 = vpop.permute.xlu0 %511
  %v514 = vmul.f32 %v512, %v508
  %v515 = vadd.f32 %v432, %v514
  %v516 = vtanh.pop %v515
  %518 = vrot.lane.b32.xlu0 %v516, 64
  %v519 = vpop.permute.xlu0 %518
  %v521 = vmul.f32 %v495, %v519
  %523 = vrot.lane.b32.xlu0 %v449, 64
  %v524 = vpop.permute.xlu0 %523
  %v526 = vsub.f32 %v521, %v524
  %v527 = vmul.f32 %v512, %v526
  %529 = vrot.lane.b32.xlu0 %v527, 64
  %v530 = vpop.permute.xlu0 %529
  %v532 = vadd.f32 %v449, %v530
  %v533 = vsel %vm44, %v532, %v495
  %v534 = vsel %vm118, %v533, %v495
  %v535 = vsel %vm120, %v534, %v496
  %s536 = scalar_lea.vmem %s3, 40
  %537 = vst [vmem:[%s536] sm:$0xff] %v535
  %s538 = scalar_lea.vmem %s0, 24
  %v539 = vld [vmem:[%s538] sm:$0xf]
  %v540 = vunpack.c.l.bf16 %v539
  %s541 = scalar_lea.vmem %s1, 48
  %v542 = vld [vmem:[%s541] sm:$0xff]
  %v543 = vpack.c.bf16 %v532, %v532
  %v545 = vsel %vm44, %v543, 0
  %547 = vmatpush.bf16.msra.mxu0 0
  %548 = vmatpush.bf16.msra.mxu0 0
  %549 = vmatpush.bf16.msra.mxu0 0
  %550 = vmatpush.bf16.msra.mxu0 0
  %551 = vmatpush.bf16.msra.mxu0 0
  %552 = vmatpush.bf16.msra.mxu0 0
  %553 = vmatpush.bf16.msra.mxu0 %v41
  %554 = vmatpush.bf16.msra.mxu0 %v40
  %555 = vmatmul.bf16.gmra.mxu0 %v545
  %v556 = vpop.f32.mrf.mxu0
  %v557 = vadd.f32 %v540, %v556
  %v558 = vpop.f32.mrf.mxu0
  %559 = vdwg.mxu0
  %v560 = vxor.u32 %v557, 2147483648
  %v561 = vmul.f32 %v560, 1.442695
  %v562 = vpow.pop %v561
  %v563 = vadd.f32 %v562, 1.0
  %v564 = vrcp.pop %v563
  %v565 = vmul.f32 %v563, %v564
  %v566 = vsub.f32 1.0, %v565
  %v567 = vmul.f32 %v564, %v566
  %v568 = vadd.f32 %v564, %v567
  %vm569 = vweird.f32 %v563
  %vm570 = vweird.f32 %v564
  %vm571 = vmor %vm569, %vm570
  %v572 = vsel %vm571, %v564, %v568
  %v573 = vand.u32 2147483647, %v563
  %vm574 = vcmp.eq.f32.partialorder %v573, 8.507059e+37
  %v575 = vand.u32 %v563, 2147483648
  %v576 = vor.u32 1.1754944e-38, %v575
  %v577 = vsel %vm574, %v576, %v572
  %v578 = vmul.f32 1.0, %v577
  %v579 = vtanh.pop %v557
  %v580 = vmul.f32 %v578, %v515
  %582 = vrot.lane.b32.xlu0 %v579, 64
  %v583 = vpop.permute.xlu0 %582
  %v585 = vmul.f32 %v578, %v583
  %587 = vrot.lane.b32.xlu0 %v585, 96
  %v588 = vpop.permute.xlu0 %587
  %v590 = vadd.f32 %v580, %v588
  %v591 = vsub.f32 %v590, %v515
  %593 = vset.pattern.permute.xlu0 0
  %594 = vperm.xlu0 %593, %v542
  %v595 = vpop.permute.xlu0 %594
  %v597 = vmul.f32 %v595, %v591
  %v598 = vadd.f32 %v515, %v597
  %v599 = vtanh.pop %v598
  %601 = vrot.lane.b32.xlu0 %v599, 64
  %v602 = vpop.permute.xlu0 %601
  %v604 = vmul.f32 %v578, %v602
  %606 = vrot.lane.b32.xlu0 %v532, 64
  %v607 = vpop.permute.xlu0 %606
  %v609 = vsub.f32 %v604, %v607
  %v610 = vmul.f32 %v595, %v609
  %612 = vrot.lane.b32.xlu0 %v610, 64
  %v613 = vpop.permute.xlu0 %612
  %v615 = vadd.f32 %v532, %v613
  %v616 = vsel %vm44, %v615, %v578
  %v617 = vsel %vm118, %v616, %v578
  %v618 = vsel %vm120, %v617, %v579
  %s619 = scalar_lea.vmem %s3, 48
  %620 = vst [vmem:[%s619] sm:$0xff] %v618
  %s621 = scalar_lea.vmem %s0, 28
  %v622 = vld [vmem:[%s621] sm:$0xf]
  %v623 = vunpack.c.l.bf16 %v622
  %s624 = scalar_lea.vmem %s1, 56
  %v625 = vld [vmem:[%s624] sm:$0xff]
  %v626 = vpack.c.bf16 %v615, %v615
  %v628 = vsel %vm44, %v626, 0
  %630 = vmatpush.bf16.msra.mxu0 0
  %631 = vmatpush.bf16.msra.mxu0 0
  %632 = vmatpush.bf16.msra.mxu0 0
  %633 = vmatpush.bf16.msra.mxu0 0
  %634 = vmatpush.bf16.msra.mxu0 0
  %635 = vmatpush.bf16.msra.mxu0 0
  %636 = vmatpush.bf16.msra.mxu0 %v41
  %637 = vmatpush.bf16.msra.mxu0 %v40
  %638 = vmatmul.bf16.gmra.mxu0 %v628
  %v639 = vpop.f32.mrf.mxu0
  %v640 = vadd.f32 %v623, %v639
  %v641 = vpop.f32.mrf.mxu0
  %642 = vdwg.mxu0
  %v643 = vxor.u32 %v640, 2147483648
  %v644 = vmul.f32 %v643, 1.442695
  %v645 = vpow.pop %v644
  %v646 = vadd.f32 %v645, 1.0
  %v647 = vrcp.pop %v646
  %v648 = vmul.f32 %v646, %v647
  %v649 = vsub.f32 1.0, %v648
  %v650 = vmul.f32 %v647, %v649
  %v651 = vadd.f32 %v647, %v650
  %vm652 = vweird.f32 %v646
  %vm653 = vweird.f32 %v647
  %vm654 = vmor %vm652, %vm653
  %v655 = vsel %vm654, %v647, %v651
  %v656 = vand.u32 2147483647, %v646
  %vm657 = vcmp.eq.f32.partialorder %v656, 8.507059e+37
  %v658 = vand.u32 %v646, 2147483648
  %v659 = vor.u32 1.1754944e-38, %v658
  %v660 = vsel %vm657, %v659, %v655
  %v661 = vmul.f32 1.0, %v660
  %v662 = vtanh.pop %v640
  %v663 = vmul.f32 %v661, %v598
  %665 = vrot.lane.b32.xlu0 %v662, 64
  %v666 = vpop.permute.xlu0 %665
  %v668 = vmul.f32 %v661, %v666
  %670 = vrot.lane.b32.xlu0 %v668, 96
  %v671 = vpop.permute.xlu0 %670
  %v673 = vadd.f32 %v663, %v671
  %v674 = vsub.f32 %v673, %v598
  %676 = vset.pattern.permute.xlu0 0
  %677 = vperm.xlu0 %676, %v625
  %v678 = vpop.permute.xlu0 %677
  %v680 = vmul.f32 %v678, %v674
  %v681 = vadd.f32 %v598, %v680
  %v682 = vtanh.pop %v681
  %684 = vrot.lane.b32.xlu0 %v682, 64
  %v685 = vpop.permute.xlu0 %684
  %v687 = vmul.f32 %v661, %v685
  %689 = vrot.lane.b32.xlu0 %v615, 64
  %v690 = vpop.permute.xlu0 %689
  %v692 = vsub.f32 %v687, %v690
  %v693 = vmul.f32 %v678, %v692
  %695 = vrot.lane.b32.xlu0 %v693, 64
  %v696 = vpop.permute.xlu0 %695
  %v698 = vadd.f32 %v615, %v696
  %v699 = vsel %vm44, %v698, %v661
  %v700 = vsel %vm118, %v699, %v661
  %v701 = vsel %vm120, %v700, %v662
  %s702 = scalar_lea.vmem %s3, 56
  %703 = vst [vmem:[%s702] sm:$0xff] %v701
  %704 = vst.msk [vmem:[#allocation2] sm:$0xff] %vm44, %v698
  %705 = vst.msk [vmem:[#allocation3] sm:$0xff] %vm44, %v681
  // Predicated region
  $region18: #{lstm_forward.1} parent=0 // pred_check
    _
  $region19: #{lstm_forward.1} parent=0 // pred_check_branch
    %707 = sbr.rel (0) target = $region21
  $region20: #{lstm_forward.1} parent=0 // pred_region
    _
  $region21: #{lstm_forward.1} parent=0 // pred_fallthru
    _
  // Predicated region
  $region22: #{lstm_forward.1} parent=0 // pred_check
    _
  $region23: #{lstm_forward.1} parent=0 // pred_check_branch
    %709 = sbr.rel (0) target = $region25
  $region24: #{lstm_forward.1} parent=0 // pred_region
    _
  $region25: #{lstm_forward.1} parent=0 // pred_fallthru
    _

</llo_original>
